<compile_context>
chip_gen: v7x
topology: tpu7x:2x2x1
jax: 0.10.0
libtpu: 0.0.40
codegen_flags: <defaults>
</compile_context>

<pallas_src>
from functools import lru_cache

import jax
import jax.numpy as jnp
import numpy as np
from jax.experimental import pallas as pl
from jax.experimental.pallas import tpu as pltpu


def _round_up(x: int, m: int) -> int:
    return ((x + m - 1) // m) * m


def _pool_matrix(in_size: int, out_size: int) -> np.ndarray:
    """P of shape (out, in), f32, with P @ v == adaptive_avg_pool1d(v).

    PyTorch window rule: start = floor(i*in/out), end = ceil((i+1)*in/out).
    """
    i = np.arange(out_size)
    starts = (i * in_size) // out_size
    ends = -(-((i + 1) * in_size) // out_size)  # ceil division
    idx = np.arange(in_size)
    mask = (idx[None, :] >= starts[:, None]) & (idx[None, :] < ends[:, None])
    counts = (ends - starts).astype(np.float32)
    return mask.astype(np.float32) / counts[:, None]


@lru_cache(maxsize=None)
def _fused_pool_matrix_T_np(h: int, w: int, oh: int, ow: int,
                            hw_pad: int, op: int) -> np.ndarray:
    """P2d^T of shape (hw_pad, op) in float32 (zero-padded on both axes)."""
    ph = _pool_matrix(h, oh)                            # (OH, H)
    pw = _pool_matrix(w, ow)                            # (OW, W)
    p2d_t = np.ascontiguousarray(np.kron(ph, pw).T)     # (H*W, OH*OW)
    pad_rows = hw_pad - h * w
    pad_cols = op - oh * ow
    if pad_rows or pad_cols:
        p2d_t = np.pad(p2d_t, ((0, pad_rows), (0, pad_cols)))
    return p2d_t.astype(np.float32)


def _adaptive_pool_kernel(x_ref, p_ref, o_ref, acc_ref):
    # x_ref: (TB, TK), p_ref: (TK, OP), o_ref: (TB, OP), acc_ref: (TB, OP) f32
    @pl.when(pl.program_id(1) == 0)
    def _init():
        acc_ref[...] = jnp.zeros_like(acc_ref)

    acc_ref[...] += jnp.dot(x_ref[...].astype(jnp.float32), p_ref[...],
                            preferred_element_type=jnp.float32)

    @pl.when(pl.program_id(1) == pl.num_programs(1) - 1)
    def _finalize():
        o_ref[...] = acc_ref[...].astype(o_ref.dtype)


class TokenDownLayer:
    """Pallas TPU TokenDownLayer: AdaptiveAvgPool2d((shape1, shape2)).

    No learnable parameters (nn.AdaptiveAvgPool2d has none).
    """

    _VMEM_BUDGET = 20 << 20   # conservative working-set target (fits all chips)

    def __init__(self, shape1: int, shape2: int):
        self.shape1 = shape1
        self.shape2 = shape2

    def __call__(self, x: jnp.ndarray) -> jnp.ndarray:
        n, c, h, w = x.shape
        oh, ow = self.shape1, self.shape2
        hw = h * w
        op = _round_up(oh * ow, 128)          # lane-dense padded output width
        nc = n * c
        itemsize = x.dtype.itemsize

        def vmem_bytes(tb_, tk_):
            return (2 * tb_ * tk_ * itemsize      # x blocks (double-buffered)
                    + 2 * tk_ * op * 4            # pooling-matrix blocks
                    + 2 * tb_ * op * itemsize     # output blocks
                    + tb_ * op * 4)               # f32 accumulator scratch

        # Batch tile: up to 256 rows (feeds the 256-wide MXU on v6e/v7x; 128 is
        # already fine on v5e), 8-aligned, shrunk for tiny problems.
        tb = min(256, _round_up(nc, 8))
        # Contraction tile: full H*W when it fits; otherwise split into 128-multiples.
        tk = hw
        while vmem_bytes(tb, tk) > self._VMEM_BUDGET and tk > 128:
            tk = max(128, _round_up(tk // 2, 128))
        while vmem_bytes(tb, tk) > self._VMEM_BUDGET and tb > 8:
            tb = max(8, _round_up(tb // 2, 8))
        if tk >= hw:
            tk = hw

        hw_pad = hw if tk == hw else _round_up(hw, tk)
        nc_pad = _round_up(nc, tb)
        k_tiles = hw_pad // tk

        p2d_t = jnp.asarray(_fused_pool_matrix_T_np(h, w, oh, ow, hw_pad, op))

        xf = x.reshape(nc, hw)
        if nc_pad != nc or hw_pad != hw:
            xf = jnp.pad(xf, ((0, nc_pad - nc), (0, hw_pad - hw)))

        out = pl.pallas_call(
            _adaptive_pool_kernel,
            out_shape=jax.ShapeDtypeStruct((nc_pad, op), x.dtype),
            grid=(nc_pad // tb, k_tiles),
            in_specs=[
                pl.BlockSpec((tb, tk), lambda b, k: (b, k)),
                pl.BlockSpec((tk, op), lambda b, k: (k, 0)),
            ],
            out_specs=pl.BlockSpec((tb, op), lambda b, k: (b, 0)),
            scratch_shapes=[pltpu.VMEM((tb, op), jnp.float32)],
            compiler_params=pltpu.CompilerParams(
                dimension_semantics=("parallel", "arbitrary"),
                vmem_limit_bytes=32 * 1024 * 1024,
            ),
        )(xf, p2d_t)

        return out[:nc, : oh * ow].reshape(n, c, oh, ow)


def _reference_adaptive_avg_pool2d(x_np, oh, ow):
    n, c, h, w = x_np.shape
    out = np.zeros((n, c, oh, ow), dtype=np.float32)
    for i in range(oh):
        hs = (i * h) // oh
        he = -(-((i + 1) * h) // oh)
        for j in range(ow):
            ws = (j * w) // ow
            we = -(-((j + 1) * w) // ow)
            out[:, :, i, j] = x_np[:, :, hs:he, ws:we].mean(axis=(2, 3))
    return out


if __name__ == "__main__":
    key = jax.random.PRNGKey(0)
    N, C, H, W = 2, 4, 16, 16
    SHAPE1, SHAPE2 = 6, 6  # non-divisible output -> exercises uneven adaptive windows

    x = jax.random.normal(key, (N, C, H, W), dtype=jnp.float32)

    layer = TokenDownLayer(SHAPE1, SHAPE2)
    y = jax.block_until_ready(layer(x))

    assert y.shape == (N, C, SHAPE1, SHAPE2)
    ref = _reference_adaptive_avg_pool2d(np.asarray(x), SHAPE1, SHAPE2)
    np.testing.assert_allclose(np.asarray(y), ref, rtol=1e-5, atol=1e-5)

    print("KERNEL_OK")
</pallas_src>

<mosaic_0001>
module attributes {stable_mosaic.version = 11 : i64} {
  func.func @_adaptive_pool_kernel(%arg0: i32, %arg1: i32, %arg2: memref<8x256xf32, #tpu.memory_space<vmem>>, %arg3: memref<256x128xf32, #tpu.memory_space<vmem>>, %arg4: memref<8x128xf32, #tpu.memory_space<vmem>>, %arg5: memref<8x128xf32, #tpu.memory_space<vmem>>) attributes {dimension_semantics = [#tpu.dimension_semantics<parallel>, #tpu.dimension_semantics<arbitrary>], iteration_bounds = array<i64: 1, 1>, scalar_prefetch = 0 : i64, scratch_operands = 1 : i64, tpu.core_type = #tpu.core_type<tc>, window_params = [{transform_indices = @transform_0, window_bounds = array<i64: 8, 256>}, {transform_indices = @transform_1, window_bounds = array<i64: 256, 128>}, {transform_indices = @transform_2, window_bounds = array<i64: 8, 128>}]} {
    %c0_i32 = arith.constant 0 : i32
    %0 = arith.cmpi eq, %arg1, %c0_i32 : i32
    %1 = arith.extui %0 : i1 to i32
    %c0_i32_0 = arith.constant 0 : i32
    %2 = arith.cmpi ne, %1, %c0_i32_0 : i32
    scf.if %2 {
      %cst_10 = arith.constant 0.000000e+00 : f32
      %12 = vector.broadcast %cst_10 : f32 to vector<8x128xf32>
      %c0_11 = arith.constant 0 : index
      %c0_12 = arith.constant 0 : index
      %13 = vector.load %arg5[%c0_11, %c0_12] : memref<8x128xf32, #tpu.memory_space<vmem>>, vector<8x128xf32>
      tpu.vector_store %arg5[%c0_11, %c0_12], %12 {strides = array<i32>} : memref<8x128xf32, #tpu.memory_space<vmem>>, vector<8x128xf32>,
    } else {
    }
    %c0 = arith.constant 0 : index
    %c0_1 = arith.constant 0 : index
    %3 = vector.load %arg5[%c0, %c0_1] : memref<8x128xf32, #tpu.memory_space<vmem>>, vector<8x128xf32>
    %c0_2 = arith.constant 0 : index
    %c0_3 = arith.constant 0 : index
    %4 = vector.load %arg2[%c0_2, %c0_3] : memref<8x256xf32, #tpu.memory_space<vmem>>, vector<8x256xf32>
    %c0_4 = arith.constant 0 : index
    %c0_5 = arith.constant 0 : index
    %5 = vector.load %arg3[%c0_4, %c0_5] : memref<256x128xf32, #tpu.memory_space<vmem>>, vector<256x128xf32>
    %cst = arith.constant dense<0.000000e+00> : vector<8x128xf32>
    %6 = tpu.matmul %4, %5, %cst {dimension_numbers = #tpu.dot_dimension_numbers<[1], [0], [0], [1], [0, 0, 1, 1], [], []>} : vector<8x256xf32>, vector<256x128xf32>, vector<8x128xf32> -> vector<8x128xf32>
    %7 = arith.addf %3, %6 : vector<8x128xf32>
    %c0_6 = arith.constant 0 : index
    %c0_7 = arith.constant 0 : index
    %8 = vector.load %arg5[%c0_6, %c0_7] : memref<8x128xf32, #tpu.memory_space<vmem>>, vector<8x128xf32>
    tpu.vector_store %arg5[%c0_6, %c0_7], %7 {strides = array<i32>} : memref<8x128xf32, #tpu.memory_space<vmem>>, vector<8x128xf32>,
    %c0_i32_8 = arith.constant 0 : i32
    %9 = arith.cmpi eq, %arg1, %c0_i32_8 : i32
    %10 = arith.extui %9 : i1 to i32
    %c0_i32_9 = arith.constant 0 : i32
    %11 = arith.cmpi ne, %10, %c0_i32_9 : i32
    scf.if %11 {
      %c0_10 = arith.constant 0 : index
      %c0_11 = arith.constant 0 : index
      %12 = vector.load %arg5[%c0_10, %c0_11] : memref<8x128xf32, #tpu.memory_space<vmem>>, vector<8x128xf32>
      %c0_12 = arith.constant 0 : index
      %c0_13 = arith.constant 0 : index
      %13 = vector.load %arg4[%c0_12, %c0_13] : memref<8x128xf32, #tpu.memory_space<vmem>>, vector<8x128xf32>
      tpu.vector_store %arg4[%c0_12, %c0_13], %12 {strides = array<i32>} : memref<8x128xf32, #tpu.memory_space<vmem>>, vector<8x128xf32>,
    } else {
    }
    return
  }
  func.func @transform_0(%arg0: i32, %arg1: i32) -> (i32, i32) {
    %c0_i32 = arith.constant 0 : i32
    return %arg0, %arg1 : i32, i32
  }
  func.func @transform_1(%arg0: i32, %arg1: i32) -> (i32, i32) {
    %c0_i32 = arith.constant 0 : i32
    %c0_i32_0 = arith.constant 0 : i32
    return %arg1, %c0_i32 : i32, i32
  }
  func.func @transform_2(%arg0: i32, %arg1: i32) -> (i32, i32) {
    %c0_i32 = arith.constant 0 : i32
    %c0_i32_0 = arith.constant 0 : i32
    return %arg0, %c0_i32 : i32, i32
  }
}

</mosaic_0001>

<llo_original>
// kernel: tpu_custom_call.1
$region0: #{tpu_custom_call.1}
  #allocation0 [shape = 'u32[]', space=smem, size = 0x4, offset = 0x4, fixed_abs, tag = 'smem constant byte address 0x4 - core index']
  #allocation1 [shape = 'u32[144,128]{1,0:T(1,128)}', space=vmem, size = 0x12000, scoped, tag = 'internal scratch']
  #allocation2 [shape = 'f32[8,128]{1,0:T(8,128)}', space=vmem, size = 0x1000, scoped, tag = 'scratch operand']
  %s0 = inlined_call_operand.hbm [shape: f32[8,256], index: 0, kind: input, shape index: {}]
  %s1 = inlined_call_operand.hbm [shape: f32[256,128], index: 1, kind: input, shape index: {}]
  %s2 = inlined_call_operand.hbm [shape: f32[8,128], index: 2, kind: output, shape index: {}]
  %s3 = sld [smem:[#allocation0]]
  $region34: #{tpu_custom_call.1} parent=0
    _
  %s5 = ssub.s32 1, %s3
  %s6 = scalar_select 0, %s5, %s3
  $region1: #{tpu_custom_call.1} parent=0
    #allocation3 [shape = 'u8[8192]{0}', space=vmem, size = 0x2000, scoped, tag = 'input window, operand 0, single buffered']
    #allocation4 [shape = 's32[1]{0}', space=sflag, size = 0x4, scoped, tag = 'scoped memory for tpu_custom_call.1']
    #allocation5 [shape = 's32[1]{0}', space=sflag, size = 0x4, scoped, tag = 'scoped memory for tpu_custom_call.1']
    #allocation6 [shape = 'u8[131072]{0}', space=vmem, size = 0x20000, scoped, tag = 'input window, operand 1, single buffered']
    #allocation7 [shape = 's32[1]{0}', space=sflag, size = 0x4, scoped, tag = 'scoped memory for tpu_custom_call.1']
    #allocation8 [shape = 'u8[4096]{0}', space=vmem, size = 0x1000, scoped, tag = 'output window, operand 0, single buffered']
    %7 = vsyncpa [#allocation4], 0
    %8 = vsyncpa [#allocation7], 0
    %9 = vsyncpa [#allocation5], 0
    // Predicated region
    $region2: #{tpu_custom_call.1} parent=1 // pred_check
      _
    $region3: #{tpu_custom_call.1} parent=1 // pred_check_branch
      %11 = sbr.rel (0) target = $region5
    $region4: #{tpu_custom_call.1} parent=1 // pred_region
      %s13 = ssub.s32 256, 256
      %14 = vsyncadd [#allocation4], %s13
      %s16 = sshll.u32 [#allocation3], 4
      %s17 = int_to_ptr.vmem [resolvable:$true] %s16
      %19 = dma.hbm_to_vmem [thread:$0]  %s0, 256, %s17, [#allocation4]
    $region5: #{tpu_custom_call.1} parent=1 // pred_fallthru
      _
    // Predicated region
    $region6: #{tpu_custom_call.1} parent=1 // pred_check
      _
    $region7: #{tpu_custom_call.1} parent=1 // pred_check_branch
      %21 = sbr.rel (0) target = $region9
    $region8: #{tpu_custom_call.1} parent=1 // pred_region
      %s23 = ssub.s32 4096, 4096
      %24 = vsyncadd [#allocation7], %s23
      %s25 = sshll.u32 [#allocation6], 4
      %s26 = int_to_ptr.vmem [resolvable:$true] %s25
      %31 = dma.hbm_to_vmem [thread:$0]  %s1, 4096, %s26, [#allocation7], 128, 128, 8
    $region9: #{tpu_custom_call.1} parent=1 // pred_fallthru
      _
    // Predicated region
    $region10: #{tpu_custom_call.1} parent=1 // pred_check
      _
    $region11: #{tpu_custom_call.1} parent=1 // pred_check_branch
      %33 = sbr.rel (0) target = $region13
    $region12: #{tpu_custom_call.1} parent=1 // pred_region
      %34 = dma.done [#allocation4], 256
    $region13: #{tpu_custom_call.1} parent=1 // pred_fallthru
      _
    // Predicated region
    $region14: #{tpu_custom_call.1} parent=1 // pred_check
      _
    $region15: #{tpu_custom_call.1} parent=1 // pred_check_branch
      %36 = sbr.rel (0) target = $region17
    $region16: #{tpu_custom_call.1} parent=1 // pred_region
      %37 = dma.done [#allocation7], 4096
    $region17: #{tpu_custom_call.1} parent=1 // pred_fallthru
      _
    %p38 = scmp.eq.s32.totalorder 0, 0
    // Predicated region
    $region18: #{tpu_custom_call.1} parent=1 // pred_check
      %p39 = pneg %p38
    $region19: #{tpu_custom_call.1} parent=1 // pred_check_branch
      %41 = sbr.rel (%p39) target = $region21
    $region20: #{tpu_custom_call.1} parent=1 // pred_region
      %42 = vst [vmem:[#allocation2] sm:$0xff] 0.0
    $region21: #{tpu_custom_call.1} parent=1 // pred_fallthru
      _
    %v43 = vld [vmem:[#allocation2] sm:$0xff]
    %v44 = vld [vmem:[#allocation3] sm:$0xff]
    %v45 = vld [vmem:[#allocation3 + $0x8] sm:$0xff]
    %v46 = vld [vmem:[#allocation6] sm:$0xff]
    %v47 = vld [vmem:[#allocation6 + $0x8] sm:$0xff]
    %v48 = vld [vmem:[#allocation6 + $0x10] sm:$0xff]
    %v49 = vld [vmem:[#allocation6 + $0x18] sm:$0xff]
    %v50 = vld [vmem:[#allocation6 + $0x20] sm:$0xff]
    %v51 = vld [vmem:[#allocation6 + $0x28] sm:$0xff]
    %v52 = vld [vmem:[#allocation6 + $0x30] sm:$0xff]
    %v53 = vld [vmem:[#allocation6 + $0x38] sm:$0xff]
    %v54 = vld [vmem:[#allocation6 + $0x40] sm:$0xff]
    %v55 = vld [vmem:[#allocation6 + $0x48] sm:$0xff]
    %v56 = vld [vmem:[#allocation6 + $0x50] sm:$0xff]
    %v57 = vld [vmem:[#allocation6 + $0x58] sm:$0xff]
    %v58 = vld [vmem:[#allocation6 + $0x60] sm:$0xff]
    %v59 = vld [vmem:[#allocation6 + $0x68] sm:$0xff]
    %v60 = vld [vmem:[#allocation6 + $0x70] sm:$0xff]
    %v61 = vld [vmem:[#allocation6 + $0x78] sm:$0xff]
    %v62 = vld [vmem:[#allocation6 + $0x80] sm:$0xff]
    %v63 = vld [vmem:[#allocation6 + $0x88] sm:$0xff]
    %v64 = vld [vmem:[#allocation6 + $0x90] sm:$0xff]
    %v65 = vld [vmem:[#allocation6 + $0x98] sm:$0xff]
    %v66 = vld [vmem:[#allocation6 + $0xa0] sm:$0xff]
    %v67 = vld [vmem:[#allocation6 + $0xa8] sm:$0xff]
    %v68 = vld [vmem:[#allocation6 + $0xb0] sm:$0xff]
    %v69 = vld [vmem:[#allocation6 + $0xb8] sm:$0xff]
    %v70 = vld [vmem:[#allocation6 + $0xc0] sm:$0xff]
    %v71 = vld [vmem:[#allocation6 + $0xc8] sm:$0xff]
    %v72 = vld [vmem:[#allocation6 + $0xd0] sm:$0xff]
    %v73 = vld [vmem:[#allocation6 + $0xd8] sm:$0xff]
    %v74 = vld [vmem:[#allocation6 + $0xe0] sm:$0xff]
    %v75 = vld [vmem:[#allocation6 + $0xe8] sm:$0xff]
    %v76 = vld [vmem:[#allocation6 + $0xf0] sm:$0xff]
    %v77 = vld [vmem:[#allocation6 + $0xf8] sm:$0xff]
    %78 = vmatprep.subr.mxu0 0.0
    %79 = vmatpush1.msra.mxu0 %v46
    %80 = vmatprep.subr.mxu0 0.0
    %81 = vmatpush1.msra.mxu0 %v47
    %82 = vmatprep.subr.mxu0 0.0
    %83 = vmatpush1.msra.mxu0 %v48
    %84 = vmatprep.subr.mxu0 0.0
    %85 = vmatpush1.msra.mxu0 %v49
    %86 = vmatprep.subr.mxu0 0.0
    %87 = vmatpush1.msra.mxu0 %v50
    %88 = vmatprep.subr.mxu0 0.0
    %89 = vmatpush1.msra.mxu0 %v51
    %90 = vmatprep.subr.mxu0 0.0
    %91 = vmatpush1.msra.mxu0 %v52
    %92 = vmatprep.subr.mxu0 0.0
    %93 = vmatpush1.msra.mxu0 %v53
    %94 = vmatprep.subr.mxu0 0.0
    %95 = vmatpush1.msra.mxu0 %v54
    %96 = vmatprep.subr.mxu0 0.0
    %97 = vmatpush1.msra.mxu0 %v55
    %98 = vmatprep.subr.mxu0 0.0
    %99 = vmatpush1.msra.mxu0 %v56
    %100 = vmatprep.subr.mxu0 0.0
    %101 = vmatpush1.msra.mxu0 %v57
    %102 = vmatprep.subr.mxu0 0.0
    %103 = vmatpush1.msra.mxu0 %v58
    %104 = vmatprep.subr.mxu0 0.0
    %105 = vmatpush1.msra.mxu0 %v59
    %106 = vmatprep.subr.mxu0 0.0
    %107 = vmatpush1.msra.mxu0 %v60
    %108 = vmatprep.subr.mxu0 0.0
    %109 = vmatpush1.msra.mxu0 %v61
    %110 = vmatprep.subr.mxu0 0.0
    %111 = vmatpush1.msra.mxu0 %v62
    %112 = vmatprep.subr.mxu0 0.0
    %113 = vmatpush1.msra.mxu0 %v63
    %114 = vmatprep.subr.mxu0 0.0
    %115 = vmatpush1.msra.mxu0 %v64
    %116 = vmatprep.subr.mxu0 0.0
    %117 = vmatpush1.msra.mxu0 %v65
    %118 = vmatprep.subr.mxu0 0.0
    %119 = vmatpush1.msra.mxu0 %v66
    %120 = vmatprep.subr.mxu0 0.0
    %121 = vmatpush1.msra.mxu0 %v67
    %122 = vmatprep.subr.mxu0 0.0
    %123 = vmatpush1.msra.mxu0 %v68
    %124 = vmatprep.subr.mxu0 0.0
    %125 = vmatpush1.msra.mxu0 %v69
    %126 = vmatprep.subr.mxu0 0.0
    %127 = vmatpush1.msra.mxu0 %v70
    %128 = vmatprep.subr.mxu0 0.0
    %129 = vmatpush1.msra.mxu0 %v71
    %130 = vmatprep.subr.mxu0 0.0
    %131 = vmatpush1.msra.mxu0 %v72
    %132 = vmatprep.subr.mxu0 0.0
    %133 = vmatpush1.msra.mxu0 %v73
    %134 = vmatprep.subr.mxu0 0.0
    %135 = vmatpush1.msra.mxu0 %v74
    %136 = vmatprep.subr.mxu0 0.0
    %137 = vmatpush1.msra.mxu0 %v75
    %138 = vmatprep.subr.mxu0 0.0
    %139 = vmatpush1.msra.mxu0 %v76
    %140 = vmatprep.subr.mxu0 0.0
    %141 = vmatpush1.msra.mxu0 %v77
    %142 = vmatprep.mubr.f32.mxu0 %v45
    %143 = vmatmul.mubr.f32.gmra.mrb[0].mxu0 %v44
    %v144 = vpop.f32.mrb[0].mxu0
    %v145 = vadd.f32 0.0, %v144
    %v146 = vpop.f32.mrb[0].mxu0
    %147 = vdwg.mxu0
    %v148 = vadd.f32 %v43, %v145
    %149 = vst [vmem:[#allocation2] sm:$0xff] %v148
    // Predicated region
    $region22: #{tpu_custom_call.1} parent=1 // pred_check
      %p150 = pneg %p38
    $region23: #{tpu_custom_call.1} parent=1 // pred_check_branch
      %152 = sbr.rel (%p150) target = $region25
    $region24: #{tpu_custom_call.1} parent=1 // pred_region
      %v153 = vld [vmem:[#allocation2] sm:$0xff]
      %154 = vst [vmem:[#allocation8] sm:$0xff] %v153
    $region25: #{tpu_custom_call.1} parent=1 // pred_fallthru
      _
    // Predicated region
    $region26: #{tpu_custom_call.1} parent=1 // pred_check
      _
    $region27: #{tpu_custom_call.1} parent=1 // pred_check_branch
      %156 = sbr.rel (0) target = $region29
    $region28: #{tpu_custom_call.1} parent=1 // pred_region
      %s158 = ssub.s32 128, 128
      %159 = vsyncadd [#allocation5], %s158
      %s161 = sshll.u32 [#allocation8], 4
      %s162 = int_to_ptr.vmem [resolvable:$true] %s161
      %164 = dma.vmem_to_hbm [thread:$0]  %s162, 128, %s2, [#allocation5]
    $region29: #{tpu_custom_call.1} parent=1 // pred_fallthru
      _
    // Predicated region
    $region30: #{tpu_custom_call.1} parent=1 // pred_check
      _
    $region31: #{tpu_custom_call.1} parent=1 // pred_check_branch
      %166 = sbr.rel (0) target = $region33
    $region32: #{tpu_custom_call.1} parent=1 // pred_region
      %167 = dma.done [#allocation5], 128
    $region33: #{tpu_custom_call.1} parent=1 // pred_fallthru
      _
    %168 = vsyncpa [#allocation4], 1
    %169 = vsyncpa [#allocation7], 1
    %170 = vsyncpa [#allocation5], 1

</llo_original>
